<compile_context>
chip_gen: v6e
topology: v6e:2x2x1
jax: 0.10.0
libtpu: 0.0.40
codegen_flags: <defaults>
</compile_context>

<pallas_src>
import jax
import jax.numpy as jnp
from jax.experimental import pallas as pl
from jax.experimental.pallas import tpu as pltpu

DIM_FEATURES = 10


def _round_up(a, m):
    return (a + m - 1) // m * m


def _sigmoid(h):
    # sigmoid(h) = 0.5 * tanh(h/2) + 0.5 : one EUP op (tanh) + two VPU ops,
    # vs. exp + full-precision divide for 1/(1+exp(-h)).  Exact same function,
    # so it matches the reference to f32 rounding.
    return 0.5 * jnp.tanh(0.5 * h) + 0.5


def decoder2_kernel(x_ref, w0_ref, b0_ref, w1_ref, b1_ref, w2_ref, b2_ref, o_ref):
    # x_ref: (tile_n, 10) row-major block straight from the (N, 10) input.
    # Contracting the feature axis of both operands gives the transposed
    # activation (15, tile_n) directly -- batch lives on the lane axis from
    # here on, with no explicit transpose and no wrapper-side copy.
    h = jnp.einsum("of,nf->on", w0_ref[...], x_ref[...],
                   preferred_element_type=jnp.float32) + b0_ref[...]        # (15, Tn)
    h = _sigmoid(h)
    h = jnp.dot(w1_ref[...], h, preferred_element_type=jnp.float32) + b1_ref[...]  # (25, Tn)
    h = _sigmoid(h)
    # Final 25 -> 1 layer: VPU broadcast-multiply + sublane (XLU) reduction
    # instead of an M=1, heavily padded MXU pass.
    o = jnp.sum(w2_ref[...] * h, axis=0, keepdims=True) + b2_ref[...]       # (1, Tn)
    o_ref[...] = _sigmoid(o).astype(o_ref.dtype)


def decoder2_forward(x, params, *, tile_n=16384):
    """x: (N, DIM_FEATURES) float32 (PyTorch layout). Returns (N, 1) float32."""
    w0, b0, w1, b1, w2, b2 = params
    N, f = x.shape
    assert f == DIM_FEATURES

    # --- tile selection ------------------------------------------------------
    # Batch goes on the lane axis -> tile must be a multiple of 128.  The x
    # block is staged as (tile_n, 10) rows, lane-padded 10 -> 128 in VMEM
    # (~512 B per batch row, double-buffered), which is what bounds tile_n.
    tile_n = max(128, _round_up(int(tile_n), 128))
    tile_n = min(tile_n, _round_up(N, 128))
    # Keep >= 2 grid steps whenever N allows it so the "parallel" grid axis
    # actually feeds both TensorCores on v7x.
    if _round_up(N, 128) >= 256 and pl.cdiv(N, tile_n) < 2:
        tile_n = _round_up(pl.cdiv(N, 2), 128)
    grid = (pl.cdiv(N, tile_n),)  # boundary blocks are partial; Pallas masks them

    # --- VMEM budget ----------------------------------------------------------
    # x (double-buffered, lane-padded to 128) : 2 * 512 B / lane
    # out (double-buffered, sublanes -> 8)    : 2 *  32 B / lane
    # h0/h1 + transients (15->16, 25->32 rows): ~384 B / lane
    per_lane_bytes = 2 * 128 * 4 + 2 * 8 * 4 + (16 + 32) * 2 * 4
    needed = tile_n * per_lane_bytes + (1 << 20)
    # Explicit limit so v5e (16 MiB scoped default) can run the same tile size
    # as v6e/v7x; generous headroom, capped below v7x's 64 MiB physical VMEM.
    vmem_limit = int(min(max(2 * needed, 32 << 20), 48 << 20))

    const_spec = lambda a: pl.BlockSpec(a.shape, lambda i: (0, 0))  # resident weights

    out_row = pl.pallas_call(
        decoder2_kernel,
        out_shape=jax.ShapeDtypeStruct((1, N), jnp.float32),
        grid=grid,
        in_specs=[
            pl.BlockSpec((tile_n, DIM_FEATURES), lambda i: (i, 0)),  # raw x rows
            const_spec(w0), const_spec(b0),
            const_spec(w1), const_spec(b1),
            const_spec(w2), const_spec(b2),
        ],
        out_specs=pl.BlockSpec((1, tile_n), lambda i: (0, i)),       # lane-dense out
        compiler_params=pltpu.CompilerParams(
            dimension_semantics=("parallel",),                       # megacore on v7x
            vmem_limit_bytes=vmem_limit,
        ),
    )(x, w0, b0, w1, b1, w2, b2)

    return out_row.reshape(N, 1)


def init_params(key):
    """torch.nn.Linear-style init.

    Weights in PyTorch (out_features, in_features) layout; biases as column
    vectors (out_features, 1) so they broadcast over the batch/lane axis.
    The final layer's weight is stored as a (25, 1) column for the VPU
    multiply-reduce formulation (identical math to l2.weight of shape (1, 25)).
    """
    k = jax.random.split(key, 6)

    def u(k_, shape, fan_in):
        bound = 1.0 / jnp.sqrt(jnp.float32(fan_in))
        return jax.random.uniform(k_, shape, jnp.float32, -bound, bound)

    w0 = u(k[0], (15, DIM_FEATURES), DIM_FEATURES)   # l0.weight
    b0 = u(k[1], (15, 1), DIM_FEATURES)              # l0.bias
    w1 = u(k[2], (25, 15), 15)                       # l1.weight
    b1 = u(k[3], (25, 1), 15)                        # l1.bias
    w2 = u(k[4], (25, 1), 25)                        # l2.weight (stored as column)
    b2 = u(k[5], (1, 1), 25)                         # l2.bias
    return (w0, b0, w1, b1, w2, b2)


def reference_forward(x, params):
    """Pure-JAX reference, same math as Decoder2.forward (exact sigmoid)."""
    w0, b0, w1, b1, w2, b2 = params

    def sig(z):
        return 1.0 / (1.0 + jnp.exp(-z))

    h = sig(x @ w0.T + b0.T)     # (N, 15)
    h = sig(h @ w1.T + b1.T)     # (N, 25)
    o = sig(h @ w2 + b2)         # (N, 1)
    return o


if __name__ == "__main__":
    key = jax.random.PRNGKey(0)
    kx, kp = jax.random.split(key)

    # N deliberately not a multiple of 128 to exercise the partial-block path,
    # and > 256 so the >=2-grid-step (v7x megacore) logic kicks in.
    N = 300
    x = jax.random.normal(kx, (N, DIM_FEATURES), dtype=jnp.float32)
    # TODO(synk): the surrounding script's `idx = torch.argsort(x.squeeze()); x = x[idx]`
    # is data-prep glue on the raw 1-D samples, not part of Decoder2.forward; omitted.

    params = init_params(kp)

    out = decoder2_forward(x, params)
    out = jax.block_until_ready(out)

    ref = reference_forward(x, params)
    assert out.shape == (N, 1)
    assert jnp.allclose(out, ref, atol=1e-5, rtol=1e-5), "mismatch vs reference"

    print("KERNEL_OK")
</pallas_src>

<mosaic_0001>
module attributes {stable_mosaic.version = 11 : i64} {
  func.func @decoder2_kernel(%arg0: i32, %arg1: memref<256x10xf32, #tpu.memory_space<vmem>>, %arg2: memref<15x10xf32, #tpu.memory_space<vmem>>, %arg3: memref<15x1xf32, #tpu.memory_space<vmem>>, %arg4: memref<25x15xf32, #tpu.memory_space<vmem>>, %arg5: memref<25x1xf32, #tpu.memory_space<vmem>>, %arg6: memref<25x1xf32, #tpu.memory_space<vmem>>, %arg7: memref<1x1xf32, #tpu.memory_space<vmem>>, %arg8: memref<1x256xf32, #tpu.memory_space<vmem>>) attributes {dimension_semantics = [#tpu.dimension_semantics<parallel>], iteration_bounds = array<i64: 2>, scalar_prefetch = 0 : i64, scratch_operands = 0 : i64, tpu.core_type = #tpu.core_type<tc>, window_params = [{transform_indices = @transform_0, window_bounds = array<i64: 256, 10>}, {pipeline_mode = #tpu.pipeline_mode<synchronous>, transform_indices = @transform_1, window_bounds = array<i64: 15, 10>}, {pipeline_mode = #tpu.pipeline_mode<synchronous>, transform_indices = @transform_2, window_bounds = array<i64: 15, 1>}, {pipeline_mode = #tpu.pipeline_mode<synchronous>, transform_indices = @transform_3, window_bounds = array<i64: 25, 15>}, {pipeline_mode = #tpu.pipeline_mode<synchronous>, transform_indices = @transform_4, window_bounds = array<i64: 25, 1>}, {pipeline_mode = #tpu.pipeline_mode<synchronous>, transform_indices = @transform_5, window_bounds = array<i64: 25, 1>}, {pipeline_mode = #tpu.pipeline_mode<synchronous>, transform_indices = @transform_6, window_bounds = array<i64: 1, 1>}, {transform_indices = @transform_7, window_bounds = array<i64: 1, 256>}]} {
    %c0 = arith.constant 0 : index
    %c0_0 = arith.constant 0 : index
    %0 = vector.load %arg2[%c0, %c0_0] : memref<15x10xf32, #tpu.memory_space<vmem>>, vector<15x10xf32>
    %c0_1 = arith.constant 0 : index
    %c0_2 = arith.constant 0 : index
    %1 = vector.load %arg1[%c0_1, %c0_2] : memref<256x10xf32, #tpu.memory_space<vmem>>, vector<256x10xf32>
    "tpu.trace_start"() <{level = 10 : i32, message = "of,nf->on"}> : () -> ()
    %cst = arith.constant dense<0.000000e+00> : vector<15x256xf32>
    %2 = tpu.matmul %0, %1, %cst {dimension_numbers = #tpu.dot_dimension_numbers<[1], [1], [0], [0], [0, 0, 1, 0], [], []>} : vector<15x10xf32>, vector<256x10xf32>, vector<15x256xf32> -> vector<15x256xf32>
    "tpu.trace_stop"() : () -> ()
    %c0_3 = arith.constant 0 : index
    %c0_4 = arith.constant 0 : index
    %3 = vector.load %arg3[%c0_3, %c0_4] : memref<15x1xf32, #tpu.memory_space<vmem>>, vector<15x1xf32>
    %4 = vector.broadcast %3 : vector<15x1xf32> to vector<15x256xf32>
    %5 = arith.addf %2, %4 : vector<15x256xf32>
    %cst_5 = arith.constant 5.000000e-01 : f32
    %6 = vector.broadcast %cst_5 : f32 to vector<15x256xf32>
    %7 = arith.mulf %6, %5 : vector<15x256xf32>
    %8 = math.tanh %7 : vector<15x256xf32>
    %cst_6 = arith.constant 5.000000e-01 : f32
    %9 = vector.broadcast %cst_6 : f32 to vector<15x256xf32>
    %10 = arith.mulf %9, %8 : vector<15x256xf32>
    %cst_7 = arith.constant 5.000000e-01 : f32
    %11 = vector.broadcast %cst_7 : f32 to vector<15x256xf32>
    %12 = arith.addf %10, %11 : vector<15x256xf32>
    %c0_8 = arith.constant 0 : index
    %c0_9 = arith.constant 0 : index
    %13 = vector.load %arg4[%c0_8, %c0_9] : memref<25x15xf32, #tpu.memory_space<vmem>>, vector<25x15xf32>
    %cst_10 = arith.constant dense<0.000000e+00> : vector<25x256xf32>
    %14 = tpu.matmul %13, %12, %cst_10 {dimension_numbers = #tpu.dot_dimension_numbers<[1], [0], [0], [1], [0, 0, 1, 1], [], []>} : vector<25x15xf32>, vector<15x256xf32>, vector<25x256xf32> -> vector<25x256xf32>
    %c0_11 = arith.constant 0 : index
    %c0_12 = arith.constant 0 : index
    %15 = vector.load %arg5[%c0_11, %c0_12] : memref<25x1xf32, #tpu.memory_space<vmem>>, vector<25x1xf32>
    %16 = vector.broadcast %15 : vector<25x1xf32> to vector<25x256xf32>
    %17 = arith.addf %14, %16 : vector<25x256xf32>
    %cst_13 = arith.constant 5.000000e-01 : f32
    %18 = vector.broadcast %cst_13 : f32 to vector<25x256xf32>
    %19 = arith.mulf %18, %17 : vector<25x256xf32>
    %20 = math.tanh %19 : vector<25x256xf32>
    %cst_14 = arith.constant 5.000000e-01 : f32
    %21 = vector.broadcast %cst_14 : f32 to vector<25x256xf32>
    %22 = arith.mulf %21, %20 : vector<25x256xf32>
    %cst_15 = arith.constant 5.000000e-01 : f32
    %23 = vector.broadcast %cst_15 : f32 to vector<25x256xf32>
    %24 = arith.addf %22, %23 : vector<25x256xf32>
    %c0_16 = arith.constant 0 : index
    %c0_17 = arith.constant 0 : index
    %25 = vector.load %arg6[%c0_16, %c0_17] : memref<25x1xf32, #tpu.memory_space<vmem>>, vector<25x1xf32>
    %26 = vector.broadcast %25 : vector<25x1xf32> to vector<25x256xf32>
    %27 = arith.mulf %26, %24 : vector<25x256xf32>
    %cst_18 = arith.constant dense<0.000000e+00> : vector<256xf32>
    %28 = vector.multi_reduction <add>, %27, %cst_18 [0] : vector<25x256xf32> to vector<256xf32>
    %29 = vector.shape_cast %28 : vector<256xf32> to vector<1x256xf32>
    %c0_19 = arith.constant 0 : index
    %c0_20 = arith.constant 0 : index
    %30 = vector.load %arg7[%c0_19, %c0_20] : memref<1x1xf32, #tpu.memory_space<vmem>>, vector<1x1xf32>
    %31 = vector.broadcast %30 : vector<1x1xf32> to vector<1x256xf32>
    %32 = arith.addf %29, %31 : vector<1x256xf32>
    %cst_21 = arith.constant 5.000000e-01 : f32
    %33 = vector.broadcast %cst_21 : f32 to vector<1x256xf32>
    %34 = arith.mulf %33, %32 : vector<1x256xf32>
    %35 = math.tanh %34 : vector<1x256xf32>
    %cst_22 = arith.constant 5.000000e-01 : f32
    %36 = vector.broadcast %cst_22 : f32 to vector<1x256xf32>
    %37 = arith.mulf %36, %35 : vector<1x256xf32>
    %cst_23 = arith.constant 5.000000e-01 : f32
    %38 = vector.broadcast %cst_23 : f32 to vector<1x256xf32>
    %39 = arith.addf %37, %38 : vector<1x256xf32>
    %c0_24 = arith.constant 0 : index
    %c0_25 = arith.constant 0 : index
    %40 = vector.load %arg8[%c0_24, %c0_25] : memref<1x256xf32, #tpu.memory_space<vmem>>, vector<1x256xf32>
    tpu.vector_store %arg8[%c0_24, %c0_25], %39 {strides = array<i32>} : memref<1x256xf32, #tpu.memory_space<vmem>>, vector<1x256xf32>,
    return
  }
  func.func @transform_0(%arg0: i32) -> (i32, i32) {
    %c0_i32 = arith.constant 0 : i32
    %c0_i32_0 = arith.constant 0 : i32
    return %arg0, %c0_i32 : i32, i32
  }
  func.func @transform_1(%arg0: i32) -> (i32, i32) {
    %c0_i32 = arith.constant 0 : i32
    %c0_i32_0 = arith.constant 0 : i32
    %c0_i32_1 = arith.constant 0 : i32
    return %c0_i32, %c0_i32_0 : i32, i32
  }
  func.func @transform_2(%arg0: i32) -> (i32, i32) {
    %c0_i32 = arith.constant 0 : i32
    %c0_i32_0 = arith.constant 0 : i32
    %c0_i32_1 = arith.constant 0 : i32
    return %c0_i32, %c0_i32_0 : i32, i32
  }
  func.func @transform_3(%arg0: i32) -> (i32, i32) {
    %c0_i32 = arith.constant 0 : i32
    %c0_i32_0 = arith.constant 0 : i32
    %c0_i32_1 = arith.constant 0 : i32
    return %c0_i32, %c0_i32_0 : i32, i32
  }
  func.func @transform_4(%arg0: i32) -> (i32, i32) {
    %c0_i32 = arith.constant 0 : i32
    %c0_i32_0 = arith.constant 0 : i32
    %c0_i32_1 = arith.constant 0 : i32
    return %c0_i32, %c0_i32_0 : i32, i32
  }
  func.func @transform_5(%arg0: i32) -> (i32, i32) {
    %c0_i32 = arith.constant 0 : i32
    %c0_i32_0 = arith.constant 0 : i32
    %c0_i32_1 = arith.constant 0 : i32
    return %c0_i32, %c0_i32_0 : i32, i32
  }
  func.func @transform_6(%arg0: i32) -> (i32, i32) {
    %c0_i32 = arith.constant 0 : i32
    %c0_i32_0 = arith.constant 0 : i32
    %c0_i32_1 = arith.constant 0 : i32
    return %c0_i32, %c0_i32_0 : i32, i32
  }
  func.func @transform_7(%arg0: i32) -> (i32, i32) {
    %c0_i32 = arith.constant 0 : i32
    %c0_i32_0 = arith.constant 0 : i32
    return %c0_i32, %arg0 : i32, i32
  }
}

</mosaic_0001>

<llo_original>
// kernel: tpu_custom_call.1
$region0: #{tpu_custom_call.1}
  #allocation0 [shape = 'u32[]', space=smem, size = 0x4, offset = 0x4, fixed_abs, tag = 'smem constant byte address 0x4 - core index']
  #allocation1 [shape = 'u32[144,128]{1,0:T(1,128)}', space=vmem, size = 0x12000, scoped, tag = 'internal scratch']
  #allocation2 [shape = 'f32[1,1]{1,0:T(1,128)S(1)}', space=vmem, size = 0x200, scoped, tag = 'scoped memory for tpu_custom_call.1']
  %s0 = inlined_call_operand.vmem [shape: f32[300,10], index: 0, kind: input, shape index: {}]
  %s1 = inlined_call_operand.vmem [shape: f32[15,10], index: 1, kind: input, shape index: {}]
  %s2 = inlined_call_operand.vmem [shape: f32[15,1], index: 2, kind: input, shape index: {}]
  %s3 = inlined_call_operand.vmem [shape: f32[25,15], index: 3, kind: input, shape index: {}]
  %s4 = inlined_call_operand.vmem [shape: f32[25,1], index: 4, kind: input, shape index: {}]
  %s5 = inlined_call_operand.vmem [shape: f32[25,1], index: 5, kind: input, shape index: {}]
  %s6 = inlined_call_operand.<no memory space> [shape: f32[1,1], index: 6, kind: input, shape index: {}]
  %s7 = inlined_call_operand.hbm [shape: f32[1,300], index: 7, kind: output, shape index: {}]
  %s8 = sld [smem:[#allocation0]]
  $region61: #{tpu_custom_call.1} parent=0
    _
  %s10 = ssub.s32 1, %s8
  %s11 = scalar_select 0, %s10, %s8
  %v12 = vstv %s6
  %13 = vst [vmem:[#allocation2] sm:$0x1] %v12
  $region1: #{tpu_custom_call.1} parent=0
    #allocation3 [shape = 'u8[2048]{0}', space=vmem, size = 0x800, scoped, tag = 'output window, operand 0']
    #allocation4 [shape = 's32[2]{0}', space=sflag, size = 0x8, scoped, tag = 'scoped memory for tpu_custom_call.1']
    %14 = vsyncpa [#allocation4], 0
    %s15 = scalar_lea.sflag [#allocation4], 1
    %16 = vsyncpa %s15, 0
    loop: start=0, step=1, limit=4
    $region2: #{tpu_custom_call.1} parent=1 // loop_pre_header
      _
    $region3: #{tpu_custom_call.1} parent=1 // loop_header
      %s18 = sphi 0, %s22
      %p19 = scmp.ge.s32.totalorder %s18, 4
      %s28 = sphi 0, %s30
      %s31 = sphi 0, %s28
      %s32 = sphi 0, %s31
      %s48 = sphi 0, %s32
      %s52 = sphi 0, %s52
      %s54 = sphi 0, %s52
      %s55 = sphi 0, %s54
      %s69 = sphi 0, %s55
      %s73 = sphi 0, %s73
      %s75 = sphi 0, %s73
      %s76 = sphi 0, %s75
      %s90 = sphi 0, %s76
      %s94 = sphi 0, %s94
      %s96 = sphi 0, %s94
      %s97 = sphi 0, %s96
      %s111 = sphi 0, %s97
      %s115 = sphi 0, %s115
      %s117 = sphi 0, %s115
      %s118 = sphi 0, %s117
      %s132 = sphi 0, %s118
      %s136 = sphi 0, %s136
      %s138 = sphi 0, %s136
      %s139 = sphi 0, %s138
      %s153 = sphi 0, %s139
      %s157 = sphi 0, %s157
      %s159 = sphi 0, %s157
      %s160 = sphi 0, %s159
      %s174 = sphi 0, %s160
      %s180 = sphi 0, %s182
      %s183 = sphi 0, %s180
      %s184 = sphi 0, %s183
      %s200 = sphi 0, %s184
    $region4: #{tpu_custom_call.1} parent=1 // loop_header_branch
      %21 = sbr.rel (%p19) target = $region8
    $region5: #{tpu_custom_call.1} parent=1 // loop_body
      %s23 = ssub.s32 %s18, 1
      %s24 = ssub.s32 %s18, 2
      %s25 = sadd.s32 %s18, 1
      %s26 = ssub.s32 %s18, %s25
      %p27 = scmp.eq.s32.totalorder %s26, 0
      %s29 = sadd.s32 %s28, 1
      %s30 = scalar_select %p27, %s28, %s29
      %p33 = pneg %p27
      %p34 = scmp.eq.s32.totalorder %s18, 1
      %p35 = por %p33, %p34
      %p36 = scmp.ne.s32.totalorder %s28, %s31
      %p37 = scmp.eq.s32.totalorder %s18, 0
      %p38 = por %p36, %p37
      %p39 = scmp.ne.s32.totalorder %s28, %s31
      %p40 = scmp.eq.s32.totalorder %s23, 1
      %p41 = por %p39, %p40
      %p42 = scmp.ne.s32.totalorder %s31, %s32
      %p43 = scmp.eq.s32.totalorder %s23, 0
      %p44 = por %p42, %p43
      %p45 = scmp.ne.s32.totalorder %s31, %s32
      %p46 = scmp.eq.s32.totalorder %s24, 1
      %p47 = por %p45, %p46
      %p49 = scmp.ne.s32.totalorder %s32, %s48
      %p50 = scmp.eq.s32.totalorder %s24, 0
      %p51 = por %p49, %p50
      %s53 = sadd.s32 %s52, 1
      %p56 = scmp.eq.s32.totalorder %s18, 1
      %p57 = scmp.ne.s32.totalorder %s52, %s54
      %p58 = scmp.eq.s32.totalorder %s18, 0
      %p59 = por %p57, %p58
      %p60 = scmp.ne.s32.totalorder %s52, %s54
      %p61 = scmp.eq.s32.totalorder %s23, 1
      %p62 = por %p60, %p61
      %p63 = scmp.ne.s32.totalorder %s54, %s55
      %p64 = scmp.eq.s32.totalorder %s23, 0
      %p65 = por %p63, %p64
      %p66 = scmp.ne.s32.totalorder %s54, %s55
      %p67 = scmp.eq.s32.totalorder %s24, 1
      %p68 = por %p66, %p67
      %p70 = scmp.ne.s32.totalorder %s55, %s69
      %p71 = scmp.eq.s32.totalorder %s24, 0
      %p72 = por %p70, %p71
      %s74 = sadd.s32 %s73, 1
      %p77 = scmp.eq.s32.totalorder %s18, 1
      %p78 = scmp.ne.s32.totalorder %s73, %s75
      %p79 = scmp.eq.s32.totalorder %s18, 0
      %p80 = por %p78, %p79
      %p81 = scmp.ne.s32.totalorder %s73, %s75
      %p82 = scmp.eq.s32.totalorder %s23, 1
      %p83 = por %p81, %p82
      %p84 = scmp.ne.s32.totalorder %s75, %s76
      %p85 = scmp.eq.s32.totalorder %s23, 0
      %p86 = por %p84, %p85
      %p87 = scmp.ne.s32.totalorder %s75, %s76
      %p88 = scmp.eq.s32.totalorder %s24, 1
      %p89 = por %p87, %p88
      %p91 = scmp.ne.s32.totalorder %s76, %s90
      %p92 = scmp.eq.s32.totalorder %s24, 0
      %p93 = por %p91, %p92
      %s95 = sadd.s32 %s94, 1
      %p98 = scmp.eq.s32.totalorder %s18, 1
      %p99 = scmp.ne.s32.totalorder %s94, %s96
      %p100 = scmp.eq.s32.totalorder %s18, 0
      %p101 = por %p99, %p100
      %p102 = scmp.ne.s32.totalorder %s94, %s96
      %p103 = scmp.eq.s32.totalorder %s23, 1
      %p104 = por %p102, %p103
      %p105 = scmp.ne.s32.totalorder %s96, %s97
      %p106 = scmp.eq.s32.totalorder %s23, 0
      %p107 = por %p105, %p106
      %p108 = scmp.ne.s32.totalorder %s96, %s97
      %p109 = scmp.eq.s32.totalorder %s24, 1
      %p110 = por %p108, %p109
      %p112 = scmp.ne.s32.totalorder %s97, %s111
      %p113 = scmp.eq.s32.totalorder %s24, 0
      %p114 = por %p112, %p113
      %s116 = sadd.s32 %s115, 1
      %p119 = scmp.eq.s32.totalorder %s18, 1
      %p120 = scmp.ne.s32.totalorder %s115, %s117
      %p121 = scmp.eq.s32.totalorder %s18, 0
      %p122 = por %p120, %p121
      %p123 = scmp.ne.s32.totalorder %s115, %s117
      %p124 = scmp.eq.s32.totalorder %s23, 1
      %p125 = por %p123, %p124
      %p126 = scmp.ne.s32.totalorder %s117, %s118
      %p127 = scmp.eq.s32.totalorder %s23, 0
      %p128 = por %p126, %p127
      %p129 = scmp.ne.s32.totalorder %s117, %s118
      %p130 = scmp.eq.s32.totalorder %s24, 1
      %p131 = por %p129, %p130
      %p133 = scmp.ne.s32.totalorder %s118, %s132
      %p134 = scmp.eq.s32.totalorder %s24, 0
      %p135 = por %p133, %p134
      %s137 = sadd.s32 %s136, 1
      %p140 = scmp.eq.s32.totalorder %s18, 1
      %p141 = scmp.ne.s32.totalorder %s136, %s138
      %p142 = scmp.eq.s32.totalorder %s18, 0
      %p143 = por %p141, %p142
      %p144 = scmp.ne.s32.totalorder %s136, %s138
      %p145 = scmp.eq.s32.totalorder %s23, 1
      %p146 = por %p144, %p145
      %p147 = scmp.ne.s32.totalorder %s138, %s139
      %p148 = scmp.eq.s32.totalorder %s23, 0
      %p149 = por %p147, %p148
      %p150 = scmp.ne.s32.totalorder %s138, %s139
      %p151 = scmp.eq.s32.totalorder %s24, 1
      %p152 = por %p150, %p151
      %p154 = scmp.ne.s32.totalorder %s139, %s153
      %p155 = scmp.eq.s32.totalorder %s24, 0
      %p156 = por %p154, %p155
      %s158 = sadd.s32 %s157, 1
      %p161 = scmp.eq.s32.totalorder %s18, 1
      %p162 = scmp.ne.s32.totalorder %s157, %s159
      %p163 = scmp.eq.s32.totalorder %s18, 0
      %p164 = por %p162, %p163
      %p165 = scmp.ne.s32.totalorder %s157, %s159
      %p166 = scmp.eq.s32.totalorder %s23, 1
      %p167 = por %p165, %p166
      %p168 = scmp.ne.s32.totalorder %s159, %s160
      %p169 = scmp.eq.s32.totalorder %s23, 0
      %p170 = por %p168, %p169
      %p171 = scmp.ne.s32.totalorder %s159, %s160
      %p172 = scmp.eq.s32.totalorder %s24, 1
      %p173 = por %p171, %p172
      %p175 = scmp.ne.s32.totalorder %s160, %s174
      %p176 = scmp.eq.s32.totalorder %s24, 0
      %p177 = por %p175, %p176
      %s178 = ssub.s32 %s18, %s25
      %p179 = scmp.eq.s32.totalorder %s178, 0
      %s181 = sadd.s32 %s180, 1
      %s182 = scalar_select %p179, %s180, %s181
      %p185 = pneg %p179
      %p186 = scmp.eq.s32.totalorder %s18, 1
      %p187 = por %p185, %p186
      %p188 = scmp.ne.s32.totalorder %s180, %s183
      %p189 = scmp.eq.s32.totalorder %s18, 0
      %p190 = por %p188, %p189
      %p191 = scmp.ne.s32.totalorder %s180, %s183
      %p192 = scmp.eq.s32.totalorder %s23, 1
      %p193 = por %p191, %p192
      %p194 = scmp.ne.s32.totalorder %s183, %s184
      %p195 = scmp.eq.s32.totalorder %s23, 0
      %p196 = por %p194, %p195
      %p197 = scmp.ne.s32.totalorder %s183, %s184
      %p198 = scmp.eq.s32.totalorder %s24, 1
      %p199 = por %p197, %p198
      %p201 = scmp.ne.s32.totalorder %s184, %s200
      %p202 = scmp.eq.s32.totalorder %s24, 0
      %p203 = por %p201, %p202
      %p204 = scmp.le.s32.totalorder 1, %s18
      %p205 = scmp.lt.s32.totalorder %s18, 3
      %p206 = pnand %p204, %p205
      %p207 = pneg %p206
      // Predicated region
      $region9: #{tpu_custom_call.1} parent=5 // pred_check
        _
      $region10: #{tpu_custom_call.1} parent=5 // pred_check_branch
        %209 = sbr.rel (%p206) target = $region12
      $region11: #{tpu_custom_call.1} parent=5 // pred_region
        %s210 = ssub.s32 %s18, 1
        // Predicated region
        $region13: #{tpu_custom_call.1} parent=11 // pred_check
          %p211 = pneg %p65
        $region14: #{tpu_custom_call.1} parent=11 // pred_check_branch
          %213 = sbr.rel (%p211) target = $region16
        $region15: #{tpu_custom_call.1} parent=11 // pred_region
          _
        $region16: #{tpu_custom_call.1} parent=11 // pred_fallthru
          _
        // Predicated region
        $region17: #{tpu_custom_call.1} parent=11 // pred_check
          %p214 = pneg %p86
        $region18: #{tpu_custom_call.1} parent=11 // pred_check_branch
          %216 = sbr.rel (%p214) target = $region20
        $region19: #{tpu_custom_call.1} parent=11 // pred_region
          _
        $region20: #{tpu_custom_call.1} parent=11 // pred_fallthru
          _
        // Predicated region
        $region21: #{tpu_custom_call.1} parent=11 // pred_check
          %p217 = pneg %p107
        $region22: #{tpu_custom_call.1} parent=11 // pred_check_branch
          %219 = sbr.rel (%p217) target = $region24
        $region23: #{tpu_custom_call.1} parent=11 // pred_region
          _
        $region24: #{tpu_custom_call.1} parent=11 // pred_fallthru
          _
        // Predicated region
        $region25: #{tpu_custom_call.1} parent=11 // pred_check
          %p220 = pneg %p128
        $region26: #{tpu_custom_call.1} parent=11 // pred_check_branch
          %222 = sbr.rel (%p220) target = $region28
        $region27: #{tpu_custom_call.1} parent=11 // pred_region
          _
        $region28: #{tpu_custom_call.1} parent=11 // pred_fallthru
          _
        // Predicated region
        $region29: #{tpu_custom_call.1} parent=11 // pred_check
          %p223 = pneg %p149
        $region30: #{tpu_custom_call.1} parent=11 // pred_check_branch
          %225 = sbr.rel (%p223) target = $region32
        $region31: #{tpu_custom_call.1} parent=11 // pred_region
          _
        $region32: #{tpu_custom_call.1} parent=11 // pred_fallthru
          _
        // Predicated region
        $region33: #{tpu_custom_call.1} parent=11 // pred_check
          %p226 = pneg %p170
        $region34: #{tpu_custom_call.1} parent=11 // pred_check_branch
          %228 = sbr.rel (%p226) target = $region36
        $region35: #{tpu_custom_call.1} parent=11 // pred_region
          _
        $region36: #{tpu_custom_call.1} parent=11 // pred_fallthru
          _
      $region12: #{tpu_custom_call.1} parent=5 // pred_fallthru
        _
      %p229 = scmp.lt.s32.totalorder %s18, 2
      // Predicated region
      $region37: #{tpu_custom_call.1} parent=5 // pred_check
        %p230 = pneg %p229
      $region38: #{tpu_custom_call.1} parent=5 // pred_check_branch
        %232 = sbr.rel (%p230) target = $region40
      $region39: #{tpu_custom_call.1} parent=5 // pred_region
        // Predicated region
        $region41: #{tpu_custom_call.1} parent=39 // pred_check
          %p233 = pneg %p38
        $region42: #{tpu_custom_call.1} parent=39 // pred_check_branch
          %235 = sbr.rel (%p233) target = $region44
        $region43: #{tpu_custom_call.1} parent=39 // pred_region
          %s236 = smul.u32 32, %s18
          %s237 = ssub.s32 38, %s236
          %p238 = scmp.lt.s32.totalorder %s237, 32
          %s239 = scalar_select %p238, %s237, 32
          %s240 = smul.u32 128, %s239
          %p241 = scmp.lt.s32.totalorder %s236, 37
          %s242 = scalar_select %p241, %s236, 37
          %s243 = smul.addr %s242, 8
          %s244 = scalar_lea.vmem %s0, %s243
          %s245 = smul.u32 32, %s18
          %s246 = ssub.s32 38, %s245
          %p247 = scmp.lt.s32.totalorder %s246, 32
          %s248 = scalar_select %p247, %s246, 32
          %s249 = smul.u32 128, %s248
        $region44: #{tpu_custom_call.1} parent=39 // pred_fallthru
          _
      $region40: #{tpu_custom_call.1} parent=5 // pred_fallthru
        _
      %p250 = scmp.le.s32.totalorder 1, %s18
      %p251 = scmp.lt.s32.totalorder %s18, 3
      %p252 = pnand %p250, %p251
      %p253 = pneg %p252
      // Predicated region
      $region45: #{tpu_custom_call.1} parent=5 // pred_check
        _
      $region46: #{tpu_custom_call.1} parent=5 // pred_check_branch
        %255 = sbr.rel (%p252) target = $region48
      $region47: #{tpu_custom_call.1} parent=5 // pred_region
        %s256 = ssub.s32 %s18, 1
        %s257 = smul.u32 32, %s23
        %s258 = ssub.s32 38, %s257
        %p259 = scmp.lt.s32.totalorder %s258, 32
        %s260 = scalar_select %p259, %s258, 32
        %s261 = smul.u32 128, %s260
        %p262 = scmp.lt.s32.totalorder %s257, 37
        %s263 = scalar_select %p262, %s257, 37
        %s264 = smul.addr %s263, 8
        %s265 = scalar_lea.vmem %s0, %s264
        %p266 = pneg %p44
        %p267 = pneg %p41
        %p268 = pneg %p65
        %p269 = pneg %p62
        %p270 = pneg %p86
        %p271 = pneg %p83
        %p272 = pneg %p107
        %p273 = pneg %p104
        %p274 = pneg %p128
        %p275 = pneg %p125
        %p276 = pneg %p149
        %p277 = pneg %p146
        %p278 = pneg %p170
        %p279 = pneg %p167
        %p280 = pneg %p196
        %p281 = pneg %p193
        %s282 = sand.u32 %s183, 1
        %s283 = scalar_lea.sflag [#allocation4], %s282
        %s284 = sand.u32 %s183, 1
        %s285 = smul.addr %s284, 2
        %s286 = scalar_lea.vmem [#allocation3], %s285
        %s287 = smul.u32 32, %s23
        %s288 = ssub.s32 38, %s287
        %p289 = scmp.lt.s32.totalorder %s288, 32
        %s290 = scalar_select %p289, %s288, 32
        %s291 = smul.u32 128, %s290
        %p292 = scmp.lt.s32.totalorder %s287, 37
        %s293 = scalar_select %p292, %s287, 37
        %s294 = smul.addr %s293, 8
        %s295 = scalar_lea.vmem %s0, %s294
        %s296 = smul.u32 32, %s23
        %s297 = ssub.s32 38, %s296
        %p298 = scmp.lt.s32.totalorder %s297, 32
        %s299 = scalar_select %p298, %s297, 32
        %s300 = smul.u32 128, %s299
        %s301 = smul.u32 2, %s23
        %s302 = ssub.s32 3, %s301
        %p303 = scmp.lt.s32.totalorder %s302, 2
        %s304 = scalar_select %p303, %s302, 2
        %s305 = smul.u32 16, %s304
        %v306 = vld [vmem:[%s1] sm:$0xff]
        %v307 = vld [vmem:[%s1 + $0x8] sm:$0x7f]
        %v308 = vld [vmem:[%s295] sm:$0xff]
        %v309 = vld [vmem:[%s295 + $0x8] sm:$0xff]
        %v310 = vld [vmem:[%s295 + $0x10] sm:$0xff]
        %v311 = vld [vmem:[%s295 + $0x18] sm:$0xff]
        %v312 = vld [vmem:[%s295 + $0x20] sm:$0xff]
        %v313 = vld [vmem:[%s295 + $0x28] sm:$0xff]
        %v314 = vld [vmem:[%s295 + $0x30] sm:$0xff]
        %v315 = vld [vmem:[%s295 + $0x38] sm:$0xff]
        %v316 = vld [vmem:[%s295 + $0x40] sm:$0xff]
        %v317 = vld [vmem:[%s295 + $0x48] sm:$0xff]
        %v318 = vld [vmem:[%s295 + $0x50] sm:$0xff]
        %v319 = vld [vmem:[%s295 + $0x58] sm:$0xff]
        %v320 = vld [vmem:[%s295 + $0x60] sm:$0xff]
        %v321 = vld [vmem:[%s295 + $0x68] sm:$0xff]
        %v322 = vld [vmem:[%s295 + $0x70] sm:$0xff]
        %v323 = vld [vmem:[%s295 + $0x78] sm:$0xff]
        %v324 = vld [vmem:[%s295 + $0x80] sm:$0xff]
        %v325 = vld [vmem:[%s295 + $0x88] sm:$0xff]
        %v326 = vld [vmem:[%s295 + $0x90] sm:$0xff]
        %v327 = vld [vmem:[%s295 + $0x98] sm:$0xff]
        %v328 = vld [vmem:[%s295 + $0xa0] sm:$0xff]
        %v329 = vld [vmem:[%s295 + $0xa8] sm:$0xff]
        %v330 = vld [vmem:[%s295 + $0xb0] sm:$0xff]
        %v331 = vld [vmem:[%s295 + $0xb8] sm:$0xff]
        %v332 = vld [vmem:[%s295 + $0xc0] sm:$0xff]
        %v333 = vld [vmem:[%s295 + $0xc8] sm:$0xff]
        %v334 = vld [vmem:[%s295 + $0xd0] sm:$0xff]
        %v335 = vld [vmem:[%s295 + $0xd8] sm:$0xff]
        %v336 = vld [vmem:[%s295 + $0xe0] sm:$0xff]
        %v337 = vld [vmem:[%s295 + $0xe8] sm:$0xff]
        %v338 = vld [vmem:[%s295 + $0xf0] sm:$0xff]
        %v339 = vld [vmem:[%s295 + $0xf8] sm:$0xff]
        %v340 = vld [vmem:[%s2] sm:$0xff]
        %v341 = vld [vmem:[%s2 + $0x8] sm:$0x7f]
        %343 = vset.pattern.permute.xlu0 0
        %344 = vperm.xlu0 %343, %v340
        %v345 = vpop.permute.xlu0 %344
        %348 = vset.pattern.permute.xlu0 0
        %349 = vperm.xlu0 %348, %v341
        %v350 = vpop.permute.xlu0 %349
        %vm352 = vcmask 80896
        %v354 = vsel %vm352, %v306, 0
        %v357 = vsel %vm352, %v307, 0
        %v360 = vsel %vm352, %v308, 0
        %v363 = vsel %vm352, %v309, 0
        %v366 = vsel %vm352, %v310, 0
        %v369 = vsel %vm352, %v311, 0
        %v372 = vsel %vm352, %v312, 0
        %v375 = vsel %vm352, %v313, 0
        %v378 = vsel %vm352, %v314, 0
        %v381 = vsel %vm352, %v315, 0
        %v384 = vsel %vm352, %v316, 0
        %v387 = vsel %vm352, %v317, 0
        %v390 = vsel %vm352, %v318, 0
        %v393 = vsel %vm352, %v319, 0
        %v396 = vsel %vm352, %v320, 0
        %v399 = vsel %vm352, %v321, 0
        %v402 = vsel %vm352, %v322, 0
        %v405 = vsel %vm352, %v323, 0
        %v408 = vsel %vm352, %v324, 0
        %v411 = vsel %vm352, %v325, 0
        %v414 = vsel %vm352, %v326, 0
        %v417 = vsel %vm352, %v327, 0
        %v420 = vsel %vm352, %v328, 0
        %v423 = vsel %vm352, %v329, 0
        %v426 = vsel %vm352, %v330, 0
        %v429 = vsel %vm352, %v331, 0
        %v432 = vsel %vm352, %v332, 0
        %v435 = vsel %vm352, %v333, 0
        %v438 = vsel %vm352, %v334, 0
        %v441 = vsel %vm352, %v335, 0
        %v444 = vsel %vm352, %v336, 0
        %v447 = vsel %vm352, %v337, 0
        %v450 = vsel %vm352, %v338, 0
        %v453 = vsel %vm352, %v339, 0
        %455 = vmatprep.subr.mxu0 0.0
        %456 = vmatpush1.xpose.msra.mxu0 %v405
        %457 = vmatprep.subr.mxu0 0.0
        %458 = vmatpush1.xpose.msra.mxu0 %v402
        %459 = vmatprep.subr.mxu0 0.0
        %460 = vmatpush1.xpose.msra.mxu0 %v399
        %461 = vmatprep.subr.mxu0 0.0
        %462 = vmatpush1.xpose.msra.mxu0 %v396
        %463 = vmatprep.subr.mxu0 0.0
        %464 = vmatpush1.xpose.msra.mxu0 %v393
        %465 = vmatprep.subr.mxu0 0.0
        %466 = vmatpush1.xpose.msra.mxu0 %v390
        %467 = vmatprep.subr.mxu0 0.0
        %468 = vmatpush1.xpose.msra.mxu0 %v387
        %469 = vmatprep.subr.mxu0 0.0
        %470 = vmatpush1.xpose.msra.mxu0 %v384
        %471 = vmatprep.subr.mxu0 0.0
        %472 = vmatpush1.xpose.msra.mxu0 %v381
        %473 = vmatprep.subr.mxu0 0.0
        %474 = vmatpush1.xpose.msra.mxu0 %v378
        %475 = vmatprep.subr.mxu0 0.0
        %476 = vmatpush1.xpose.msra.mxu0 %v375
        %477 = vmatprep.subr.mxu0 0.0
        %478 = vmatpush1.xpose.msra.mxu0 %v372
        %479 = vmatprep.subr.mxu0 0.0
        %480 = vmatpush1.xpose.msra.mxu0 %v369
        %481 = vmatprep.subr.mxu0 0.0
        %482 = vmatpush1.xpose.msra.mxu0 %v366
        %483 = vmatprep.subr.mxu0 0.0
        %484 = vmatpush1.xpose.msra.mxu0 %v363
        %485 = vmatprep.subr.mxu0 0.0
        %486 = vmatpush1.xpose.msra.mxu0 %v360
        %487 = vmatprep.subr.mxu0 0.0
        %488 = vmatpush2.xpose.msra.mxu0 %v453
        %489 = vmatprep.subr.mxu0 0.0
        %490 = vmatpush2.xpose.msra.mxu0 %v450
        %491 = vmatprep.subr.mxu0 0.0
        %492 = vmatpush2.xpose.msra.mxu0 %v447
        %493 = vmatprep.subr.mxu0 0.0
        %494 = vmatpush2.xpose.msra.mxu0 %v444
        %495 = vmatprep.subr.mxu0 0.0
        %496 = vmatpush2.xpose.msra.mxu0 %v441
        %497 = vmatprep.subr.mxu0 0.0
        %498 = vmatpush2.xpose.msra.mxu0 %v438
        %499 = vmatprep.subr.mxu0 0.0
        %500 = vmatpush2.xpose.msra.mxu0 %v435
        %501 = vmatprep.subr.mxu0 0.0
        %502 = vmatpush2.xpose.msra.mxu0 %v432
        %503 = vmatprep.subr.mxu0 0.0
        %504 = vmatpush2.xpose.msra.mxu0 %v429
        %505 = vmatprep.subr.mxu0 0.0
        %506 = vmatpush2.xpose.msra.mxu0 %v426
        %507 = vmatprep.subr.mxu0 0.0
        %508 = vmatpush2.xpose.msra.mxu0 %v423
        %509 = vmatprep.subr.mxu0 0.0
        %510 = vmatpush2.xpose.msra.mxu0 %v420
        %511 = vmatprep.subr.mxu0 0.0
        %512 = vmatpush2.xpose.msra.mxu0 %v417
        %513 = vmatprep.subr.mxu0 0.0
        %514 = vmatpush2.xpose.msra.mxu0 %v414
        %515 = vmatprep.subr.mxu0 0.0
        %516 = vmatpush2.xpose.msra.mxu0 %v411
        %517 = vmatprep.subr.mxu0 0.0
        %518 = vmatpush2.xpose.msra.mxu0 %v408
        %519 = vmatprep.mubr.f32.mxu0 0.0
        %520 = vmatmul.mubr.f32.gmra.mxu0 %v354
        %v521 = vpop.f32.mrf.mxu0
        %v522 = vadd.f32 %v345, %v521
        %v523 = vpop.f32.mrf.mxu0
        %v524 = vadd.f32 %v345, %v523
        %525 = vmatprep.mubr.f32.mxu0 0.0
        %526 = vmatmul.mubr.f32.gmra.mxu0 %v357
        %v527 = vpop.f32.mrf.mxu0
        %v528 = vadd.f32 %v350, %v527
        %v529 = vpop.f32.mrf.mxu0
        %v530 = vadd.f32 %v350, %v529
        %531 = vdwg.mxu0
        %v532 = vmul.f32 %v522, 0.5
        %v533 = vmul.f32 %v524, 0.5
        %v534 = vmul.f32 %v528, 0.5
        %v535 = vmul.f32 %v530, 0.5
        %v536 = vtanh.pop %v532
        %v537 = vtanh.pop %v533
        %v538 = vtanh.pop %v534
        %v539 = vtanh.pop %v535
        %v540 = vmul.f32 %v536, 0.5
        %v541 = vmul.f32 %v537, 0.5
        %v542 = vmul.f32 %v538, 0.5
        %v543 = vmul.f32 %v539, 0.5
        %v544 = vadd.f32 %v540, 0.5
        %v545 = vadd.f32 %v541, 0.5
        %v546 = vadd.f32 %v542, 0.5
        %v547 = vadd.f32 %v543, 0.5
        %v548 = vld [vmem:[%s3] sm:$0xff]
        %v549 = vld [vmem:[%s3 + $0x8] sm:$0xff]
        %v550 = vld [vmem:[%s3 + $0x10] sm:$0xff]
        %v551 = vld [vmem:[%s3 + $0x18] sm:$0x1]
        %v552 = vld [vmem:[%s4] sm:$0xff]
        %v553 = vld [vmem:[%s4 + $0x8] sm:$0xff]
        %v554 = vld [vmem:[%s4 + $0x10] sm:$0xff]
        %v555 = vld [vmem:[%s4 + $0x18] sm:$0x1]
        %557 = vset.pattern.permute.xlu0 0
        %558 = vperm.xlu0 %557, %v552
        %v559 = vpop.permute.xlu0 %558
        %562 = vset.pattern.permute.xlu0 0
        %563 = vperm.xlu0 %562, %v553
        %v564 = vpop.permute.xlu0 %563
        %567 = vset.pattern.permute.xlu0 0
        %568 = vperm.xlu0 %567, %v554
        %v569 = vpop.permute.xlu0 %568
        %572 = vset.pattern.permute.xlu0 0
        %573 = vperm.xlu0 %572, %v555
        %v574 = vpop.permute.xlu0 %573
        %vm576 = vcmask 121856
        %v578 = vsel %vm576, %v548, 0
        %v581 = vsel %vm576, %v549, 0
        %v584 = vsel %vm576, %v550, 0
        %v587 = vsel %vm576, %v551, 0
        %vm589 = vcmask 1046528
        %v591 = vsel %vm589, %v546, 0
        %v594 = vsel %vm589, %v547, 0
        %596 = vmatprep.subr.mxu0 0.0
        %597 = vmatpush1.msra.mxu0 0.0
        %598 = vmatprep.subr.mxu0 0.0
        %599 = vmatpush1.msra.mxu0 0.0
        %600 = vmatprep.subr.mxu0 0.0
        %601 = vmatpush1.msra.mxu0 0.0
        %602 = vmatprep.subr.mxu0 0.0
        %603 = vmatpush1.msra.mxu0 0.0
        %604 = vmatprep.subr.mxu0 0.0
        %605 = vmatpush1.msra.mxu0 0.0
        %606 = vmatprep.subr.mxu0 0.0
        %607 = vmatpush1.msra.mxu0 0.0
        %608 = vmatprep.subr.mxu0 0.0
        %609 = vmatpush1.msra.mxu0 0.0
        %610 = vmatprep.subr.mxu0 0.0
        %611 = vmatpush1.msra.mxu0 0.0
        %612 = vmatprep.subr.mxu0 0.0
        %613 = vmatpush1.msra.mxu0 0.0
        %614 = vmatprep.subr.mxu0 0.0
        %615 = vmatpush1.msra.mxu0 0.0
        %616 = vmatprep.subr.mxu0 0.0
        %617 = vmatpush1.msra.mxu0 0.0
        %618 = vmatprep.subr.mxu0 0.0
        %619 = vmatpush1.msra.mxu0 0.0
        %620 = vmatprep.subr.mxu0 0.0
        %621 = vmatpush1.msra.mxu0 0.0
        %622 = vmatprep.subr.mxu0 0.0
        %623 = vmatpush1.msra.mxu0 0.0
        %624 = vmatprep.subr.mxu0 %v594
        %625 = vmatpush1.msra.mxu0 %v591
        %626 = vmatprep.subr.mxu0 %v545
        %627 = vmatpush1.msra.mxu0 %v544
        %628 = vmatprep.subr.mxu0 0.0
        %629 = vmatpush2.msra.mxu0 0.0
        %630 = vmatprep.subr.mxu0 0.0
        %631 = vmatpush2.msra.mxu0 0.0
        %632 = vmatprep.subr.mxu0 0.0
        %633 = vmatpush2.msra.mxu0 0.0
        %634 = vmatprep.subr.mxu0 0.0
        %635 = vmatpush2.msra.mxu0 0.0
        %636 = vmatprep.subr.mxu0 0.0
        %637 = vmatpush2.msra.mxu0 0.0
        %638 = vmatprep.subr.mxu0 0.0
        %639 = vmatpush2.msra.mxu0 0.0
        %640 = vmatprep.subr.mxu0 0.0
        %641 = vmatpush2.msra.mxu0 0.0
        %642 = vmatprep.subr.mxu0 0.0
        %643 = vmatpush2.msra.mxu0 0.0
        %644 = vmatprep.subr.mxu0 0.0
        %645 = vmatpush2.msra.mxu0 0.0
        %646 = vmatprep.subr.mxu0 0.0
        %647 = vmatpush2.msra.mxu0 0.0
        %648 = vmatprep.subr.mxu0 0.0
        %649 = vmatpush2.msra.mxu0 0.0
        %650 = vmatprep.subr.mxu0 0.0
        %651 = vmatpush2.msra.mxu0 0.0
        %652 = vmatprep.subr.mxu0 0.0
        %653 = vmatpush2.msra.mxu0 0.0
        %654 = vmatprep.subr.mxu0 0.0
        %655 = vmatpush2.msra.mxu0 0.0
        %656 = vmatprep.subr.mxu0 0.0
        %657 = vmatpush2.msra.mxu0 0.0
        %658 = vmatprep.subr.mxu0 0.0
        %659 = vmatpush2.msra.mxu0 0.0
        %660 = vmatprep.mubr.f32.mxu0 0.0
        %661 = vmatmul.mubr.f32.gmra.mxu0 %v578
        %v662 = vpop.f32.mrf.mxu0
        %v663 = vadd.f32 %v559, %v662
        %v664 = vpop.f32.mrf.mxu0
        %v665 = vadd.f32 %v559, %v664
        %666 = vmatprep.mubr.f32.mxu0 0.0
        %667 = vmatmul.mubr.f32.gmra.mxu0 %v581
        %v668 = vpop.f32.mrf.mxu0
        %v669 = vadd.f32 %v564, %v668
        %v670 = vpop.f32.mrf.mxu0
        %v671 = vadd.f32 %v564, %v670
        %672 = vmatprep.mubr.f32.mxu0 0.0
        %673 = vmatmul.mubr.f32.gmra.mxu0 %v584
        %v674 = vpop.f32.mrf.mxu0
        %v675 = vadd.f32 %v569, %v674
        %v676 = vpop.f32.mrf.mxu0
        %v677 = vadd.f32 %v569, %v676
        %678 = vmatprep.mubr.f32.mxu0 0.0
        %679 = vmatmul.mubr.f32.gmra.mxu0 %v587
        %v680 = vpop.f32.mrf.mxu0
        %v681 = vadd.f32 %v574, %v680
        %v682 = vpop.f32.mrf.mxu0
        %v683 = vadd.f32 %v574, %v682
        %684 = vdwg.mxu0
        %v685 = vmul.f32 %v663, 0.5
        %v686 = vmul.f32 %v665, 0.5
        %v687 = vmul.f32 %v669, 0.5
        %v688 = vmul.f32 %v671, 0.5
        %v689 = vmul.f32 %v675, 0.5
        %v690 = vmul.f32 %v677, 0.5
        %v691 = vmul.f32 %v681, 0.5
        %v692 = vmul.f32 %v683, 0.5
        %v693 = vtanh.pop %v685
        %v694 = vtanh.pop %v686
        %v695 = vtanh.pop %v687
        %v696 = vtanh.pop %v688
        %v697 = vtanh.pop %v689
        %v698 = vtanh.pop %v690
        %v699 = vtanh.pop %v691
        %v700 = vtanh.pop %v692
        %v701 = vmul.f32 %v693, 0.5
        %v702 = vmul.f32 %v694, 0.5
        %v703 = vmul.f32 %v695, 0.5
        %v704 = vmul.f32 %v696, 0.5
        %v705 = vmul.f32 %v697, 0.5
        %v706 = vmul.f32 %v698, 0.5
        %v707 = vmul.f32 %v699, 0.5
        %v708 = vmul.f32 %v700, 0.5
        %v709 = vadd.f32 %v701, 0.5
        %v710 = vadd.f32 %v702, 0.5
        %v711 = vadd.f32 %v703, 0.5
        %v712 = vadd.f32 %v704, 0.5
        %v713 = vadd.f32 %v705, 0.5
        %v714 = vadd.f32 %v706, 0.5
        %v715 = vadd.f32 %v707, 0.5
        %v716 = vadd.f32 %v708, 0.5
        %v717 = vld [vmem:[%s5] sm:$0xff]
        %v718 = vld [vmem:[%s5 + $0x8] sm:$0xff]
        %v719 = vld [vmem:[%s5 + $0x10] sm:$0xff]
        %v720 = vld [vmem:[%s5 + $0x18] sm:$0x1]
        %722 = vset.pattern.permute.xlu0 0
        %723 = vperm.xlu0 %722, %v717
        %v724 = vpop.permute.xlu0 %723
        %727 = vset.pattern.permute.xlu0 0
        %728 = vperm.xlu0 %727, %v718
        %v729 = vpop.permute.xlu0 %728
        %732 = vset.pattern.permute.xlu0 0
        %733 = vperm.xlu0 %732, %v719
        %v734 = vpop.permute.xlu0 %733
        %737 = vset.pattern.permute.xlu0 0
        %738 = vperm.xlu0 %737, %v720
        %v739 = vpop.permute.xlu0 %738
        %v741 = vmul.f32 %v724, %v709
        %v742 = vmul.f32 %v724, %v710
        %v743 = vmul.f32 %v729, %v711
        %v744 = vmul.f32 %v729, %v712
        %v745 = vmul.f32 %v734, %v713
        %v746 = vmul.f32 %v734, %v714
        %v747 = vmul.f32 %v739, %v715
        %v748 = vmul.f32 %v739, %v716
        %v749 = vadd.f32 %v741, %v743
        %v750 = vadd.f32 %v749, %v745
        %vm751 = vcmask 1040384
        %v752 = vsel %vm751, %v747, 0.0
        %v753 = vadd.f32 %v750, %v752
        %v754 = vrot.slane %v753, 4
        %v755 = vadd.f32 %v753, %v754
        %v756 = vrot.slane %v755, 2
        %v757 = vadd.f32 %v755, %v756
        %v758 = vrot.slane %v757, 1
        %v759 = vadd.f32 %v757, %v758
        %v760 = vadd.f32 %v742, %v744
        %v761 = vadd.f32 %v760, %v746
        %v762 = vsel %vm751, %v748, 0.0
        %v763 = vadd.f32 %v761, %v762
        %v764 = vrot.slane %v763, 4
        %v765 = vadd.f32 %v763, %v764
        %v766 = vrot.slane %v765, 2
        %v767 = vadd.f32 %v765, %v766
        %v768 = vrot.slane %v767, 1
        %v769 = vadd.f32 %v767, %v768
        %v770 = vld [vmem:[#allocation2] sm:$0x1]
        %772 = vset.pattern.permute.xlu0 0
        %773 = vperm.xlu0 %772, %v770
        %v774 = vpop.permute.xlu0 %773
        %v776 = vlaneseq
        %v777 = vshrl.u32 %v776, 7
        %v778 = vsub.s32 0, %v777
        %v779 = vrot.slane %v774, %v778
        %v780 = vadd.f32 %v759, %v779
        %v781 = vadd.f32 %v769, %v779
        %v782 = vmul.f32 %v780, 0.5
        %v783 = vmul.f32 %v781, 0.5
        %v784 = vtanh.pop %v782
        %v785 = vtanh.pop %v783
        %v786 = vmul.f32 %v784, 0.5
        %v787 = vmul.f32 %v785, 0.5
        %v788 = vadd.f32 %v786, 0.5
        %v789 = vadd.f32 %v787, 0.5
        %v792 = vcombine.low %v788, %v789
        %v794 = vunpack.c.l.s4 1966171168
        %v795 = vunpack.c.0.s8 %v794
        %v796 = vlaneseq
        %v797 = vshrl.u32 %v796, 7
        %v798 = vsub.s32 %v795, %v797
        %v799 = vrot.slane %v792, %v798
        %v801 = vunpack.c.l.s4 1966171168
        %v802 = vunpack.c.0.s8 %v801
        %v803 = vlaneseq
        %v804 = vshrl.u32 %v803, 7
        %v805 = vsub.s32 %v802, %v804
        %v806 = vrot.slane %v799, %v805
        %v808 = vlaneseq
        %vm809 = vcmp.ge.s32.totalorder %v808, 0
        %vm810 = vcmp.lt.s32.totalorder %v808, 256
        %vm811 = vmand %vm809, %vm810
        %812 = vst.msk [vmem:[%s286] sm:$0x3] %vm811, %v806
        %s813 = sand.u32 %s183, 1
        %s814 = scalar_lea.sflag [#allocation4], %s813
        %s815 = sand.u32 %s183, 1
        %s816 = smul.addr %s815, 2
        %s817 = scalar_lea.vmem [#allocation3], %s816
        // Predicated region
        $region49: #{tpu_custom_call.1} parent=47 // pred_check
          %p818 = pneg %p193
        $region50: #{tpu_custom_call.1} parent=47 // pred_check_branch
          %820 = sbr.rel (%p818) target = $region52
        $region51: #{tpu_custom_call.1} parent=47 // pred_region
          %s821 = smul.u32 2, %s23
          %s822 = ssub.s32 3, %s821
          %p823 = scmp.lt.s32.totalorder %s822, 2
          %s824 = scalar_select %p823, %s822, 2
          %s825 = smul.u32 16, %s824
          %s827 = ssub.s32 32, %s825
          %828 = vsyncadd %s814, %s827
          %p829 = scmp.ne.s32.totalorder 0, %s825
          %s830 = smul.addr %s821, 16
          %s831 = scalar_lea.hbm %s7, %s830
          %s832 = sshll.u32 %s824, 4
          %s833 = sshll.u32 %s817, 4
          %s834 = int_to_ptr.vmem [resolvable:$true] %s833
          %836 = dma.vmem_to_hbm [thread:$0]  (%p829), %s834, %s832, %s831, %s814
        $region52: #{tpu_custom_call.1} parent=47 // pred_fallthru
          _
      $region48: #{tpu_custom_call.1} parent=5 // pred_fallthru
        _
      %p837 = scmp.le.s32.totalorder 2, %s18
      // Predicated region
      $region53: #{tpu_custom_call.1} parent=5 // pred_check
        %p838 = pneg %p837
      $region54: #{tpu_custom_call.1} parent=5 // pred_check_branch
        %840 = sbr.rel (%p838) target = $region56
      $region55: #{tpu_custom_call.1} parent=5 // pred_region
        %s841 = ssub.s32 %s18, 2
        // Predicated region
        $region57: #{tpu_custom_call.1} parent=55 // pred_check
          %p842 = pneg %p199
        $region58: #{tpu_custom_call.1} parent=55 // pred_check_branch
          %844 = sbr.rel (%p842) target = $region60
        $region59: #{tpu_custom_call.1} parent=55 // pred_region
          %s845 = sand.u32 %s184, 1
          %s846 = scalar_lea.sflag [#allocation4], %s845
          %s847 = sand.u32 %s184, 1
          %s848 = smul.addr %s847, 2
          %s849 = scalar_lea.vmem [#allocation3], %s848
          %850 = dma.done %s846, 32
        $region60: #{tpu_custom_call.1} parent=55 // pred_fallthru
          _
      $region56: #{tpu_custom_call.1} parent=5 // pred_fallthru
        _
    $region6: #{tpu_custom_call.1} parent=1 // loop_footer
      %s22 = sadd.s32 1, %s18
    $region7: #{tpu_custom_call.1} parent=1 // loop_footer_branch
      %17 = sbr.rel target = $region3
    $region8: #{tpu_custom_call.1} parent=1 // loop_exit
      _
    %851 = vsyncpa [#allocation4], 1
    %s852 = scalar_lea.sflag [#allocation4], 1
    %853 = vsyncpa %s852, 1

</llo_original>
